<compile_context>
chip_gen: v6e
topology: v6e:2x2x1
jax: 0.10.0
libtpu: 0.0.40
codegen_flags: <defaults>
</compile_context>

<pallas_src>
from functools import partial

import jax
import jax.numpy as jnp
import numpy as np
from jax import lax
from jax.experimental import pallas as pl
from jax.experimental.pallas import tpu as pltpu

# ----------------------------- small shapes consistent with the module ------------------
INPUT_DIM = 4
HIDDEN_DIM = 32
OUTPUT_DIM = 4
BATCH = 2
SEQ = 8

PAD = 128          # uniform fan_out / lane padding (lane-dense activations)


def _round_up(x, m):
    return ((x + m - 1) // m) * m


def _layer_dims(input_dim, hidden_dim, output_dim):
    """(fan_in, fan_out) for the 8 Linear layers, in forward order."""
    phi = [(input_dim, 30), (30, 50), (50, 50), (50, hidden_dim)]
    rho = [(hidden_dim, 50), (50, 30), (30, 10), (10, output_dim)]
    return phi + rho


def _layer_meta(input_dim, hidden_dim, output_dim):
    """Static (row_offset, padded_fan_in, fan_out) for each layer inside the packed slab."""
    meta, off = [], 0
    for fan_in, fan_out in _layer_dims(input_dim, hidden_dim, output_dim):
        kpad = _round_up(fan_in, 8)
        meta.append((off, kpad, fan_out))
        off += kpad
    return tuple(meta), off         # total slab rows (288 for the default dims)


def _elu(h):
    # ELU(alpha=1). exp(min(h,0)) keeps the untaken branch finite; ELU(0) == 0 so the
    # zero-padded lanes stay exactly zero through every layer.
    return jnp.where(h > 0, h, jnp.exp(jnp.minimum(h, 0.0)) - 1.0)


# --------------------------------------- kernel -----------------------------------------
def _make_kernel(layer_meta, seq_len, in_dim):
    """
    Kernel refs:
      x_ref   : (N, D)        flattened set elements, N = B*T (raw, no padding)
      mask_ref: (1, N)        flat mask, mask_flat[0, b*T + t] = mask[b, t]
      w_ref   : (ROWS, 128)   tightly packed weights, layer l occupies rows [off_l, off_l+kpad_l)
      b_ref   : (8, 128)      zero-padded biases, one row per layer
      out_ref : (B_pad, 128)  rho output; valid region is [:B, :output_dim]
    """
    def kernel(x_ref, mask_ref, w_ref, b_ref, out_ref):
        n = x_ref.shape[0]
        b_pad = out_ref.shape[0]

        # ---- phi: 4 Linear layers on the flattened (N, D) slab, ELU after the first 3 ----
        h = x_ref[...]
        for l in range(4):
            off, kpad, _ = layer_meta[l]
            k = in_dim if l == 0 else kpad            # layer 0: K = raw input width
            h_in = h if l == 0 else h[:, :k]          # lanes beyond fan_out are exactly 0
            h = jnp.dot(h_in, w_ref[off:off + k, :],
                        preferred_element_type=jnp.float32) + b_ref[l:l + 1, :]
            if l < 3:
                h = _elu(h)

        # ---- masked sum over set elements as ONE MXU matmul ----
        # mm[i, b*T + t] = (i == b) * mask[b, t]; built in-kernel with iota + compare
        # (no integer division: i == j // T  <=>  i*T <= j < (i+1)*T).
        row = lax.broadcasted_iota(jnp.int32, (b_pad, n), 0)
        col = lax.broadcasted_iota(jnp.int32, (b_pad, n), 1)
        in_block = (col >= row * seq_len) & (col < (row + 1) * seq_len)
        mm = jnp.where(in_block, mask_ref[...], 0.0)                 # (B_pad, N)
        h = jnp.dot(mm, h, preferred_element_type=jnp.float32)      # (B_pad, 128)

        # ---- rho: 4 Linear layers, ELU after the first 3 ----
        for l in range(4, 8):
            off, kpad, _ = layer_meta[l]
            h = jnp.dot(h[:, :kpad], w_ref[off:off + kpad, :],
                        preferred_element_type=jnp.float32) + b_ref[l:l + 1, :]
            if l < 7:
                h = _elu(h)

        out_ref[...] = h

    return kernel


# ------------------------------------ params & packing ----------------------------------
def init_params(key, input_dim, hidden_dim, output_dim):
    """PyTorch-Linear-style uniform(-1/sqrt(fan_in), 1/sqrt(fan_in)) init, (in, out) layout."""
    dims = _layer_dims(input_dim, hidden_dim, output_dim)
    keys = jax.random.split(key, 2 * len(dims))
    params = []
    for i, (fan_in, fan_out) in enumerate(dims):
        bound = 1.0 / np.sqrt(fan_in)
        w = jax.random.uniform(keys[2 * i], (fan_in, fan_out), jnp.float32, -bound, bound)
        b = jax.random.uniform(keys[2 * i + 1], (fan_out,), jnp.float32, -bound, bound)
        params.append((w, b))
    return params


def pack_params(params):
    """One-time packing (call when params are created/updated, NOT per forward).

    Weights: each layer zero-padded to (round8(fan_in), 128) and concatenated -> (ROWS, 128).
    Biases : zero-padded to 128 lanes and stacked -> (8, 128).
    """
    blocks, brows = [], []
    for w, b in params:
        fan_in, fan_out = w.shape
        kpad = _round_up(fan_in, 8)
        blocks.append(jnp.zeros((kpad, PAD), jnp.float32).at[:fan_in, :fan_out].set(w))
        brows.append(jnp.zeros((PAD,), jnp.float32).at[: b.shape[0]].set(b))
    return jnp.concatenate(blocks, axis=0), jnp.stack(brows)


# --------------------------------------- forward ----------------------------------------
def make_deepsets_forward(input_dim, hidden_dim, output_dim):
    layer_meta, total_rows = _layer_meta(input_dim, hidden_dim, output_dim)
    dims = _layer_dims(input_dim, hidden_dim, output_dim)

    @jax.jit
    def forward(x, mask, w_slab, b_slab):
        """x: (B, T, D) f32, mask: (B, T) {0,1} (any real/bool dtype), packed slabs -> (B, out)."""
        B, T, D = x.shape
        n = B * T
        b_pad = max(8, _round_up(B, 8))

        # Free reshapes only -- no per-call padding writes.
        x_flat = x.reshape(n, D)
        mask_flat = mask.astype(jnp.float32).reshape(1, n)

        kernel = _make_kernel(layer_meta, T, D)

        # Advisory cost estimate (tiny kernel -> lets XLA schedule the custom call correctly).
        flops, rows = 0, n
        for i, (fi, fo) in enumerate(dims):
            if i == 4:
                rows = B
            flops += 2 * rows * fi * fo
        flops += 2 * B * n * hidden_dim                              # masked-sum matmul
        transc = n * (30 + 50 + 50) + B * (50 + 30 + 10)             # ELU exps
        bytes_acc = 4 * (n * D + n + total_rows * PAD + 8 * PAD + b_pad * PAD)

        vmem = pl.BlockSpec(memory_space=pltpu.MemorySpace.VMEM)
        out = pl.pallas_call(
            kernel,
            out_shape=jax.ShapeDtypeStruct((b_pad, PAD), jnp.float32),
            in_specs=[vmem, vmem, vmem, vmem],
            out_specs=vmem,
            cost_estimate=pl.CostEstimate(flops=flops, transcendentals=transc,
                                          bytes_accessed=bytes_acc),
        )(x_flat, mask_flat, w_slab, b_slab)

        return out[:B, :output_dim]                                  # lane-dense slab sliced here

    return forward


# -------------------------------------- reference ---------------------------------------
def reference_forward(x, mask, params):
    """Pure-JAX reference of the same semantics (for the sanity check)."""
    def mlp(h, layers):
        for i, (w, b) in enumerate(layers):
            h = h @ w + b
            if i < len(layers) - 1:
                h = _elu(h)
        return h

    phi_p, rho_p = params[:4], params[4:]
    h = mlp(x, phi_p)                                   # (B, T, H)
    h = (h * mask[:, :, None].astype(h.dtype)).sum(axis=1)   # masked_sum over the set axis
    return mlp(h, rho_p)                                # (B, out)


if __name__ == "__main__":
    key = jax.random.PRNGKey(0)
    k_x, k_p = jax.random.split(key)

    x = jax.random.normal(k_x, (BATCH, SEQ, INPUT_DIM), jnp.float32)
    # mask: row 0 keeps all 8 set elements, row 1 keeps only the first 5.
    mask = jnp.array([[1.0] * SEQ, [1.0] * 5 + [0.0] * (SEQ - 5)], dtype=jnp.float32)

    params = init_params(k_p, INPUT_DIM, HIDDEN_DIM, OUTPUT_DIM)

    # One-time packing, hoisted out of the per-call path (perf feedback #1).
    w_slab, b_slab = pack_params(params)
    w_slab = jax.block_until_ready(jax.device_put(w_slab))
    b_slab = jax.block_until_ready(jax.device_put(b_slab))

    forward = make_deepsets_forward(INPUT_DIM, HIDDEN_DIM, OUTPUT_DIM)
    out = jax.block_until_ready(forward(x, mask, w_slab, b_slab))
    ref = reference_forward(x, mask, params)

    np.testing.assert_allclose(np.asarray(out), np.asarray(ref), rtol=1e-4, atol=1e-4)
    assert out.shape == (BATCH, OUTPUT_DIM)
    assert bool(jnp.all(jnp.isfinite(out)))

    print("KERNEL_OK")
</pallas_src>

<mosaic_0001>
module attributes {stable_mosaic.version = 11 : i64} {
  func.func @kernel(%arg0: memref<16x4xf32, #tpu.memory_space<vmem>>, %arg1: memref<1x16xf32, #tpu.memory_space<vmem>>, %arg2: memref<288x128xf32, #tpu.memory_space<vmem>>, %arg3: memref<8x128xf32, #tpu.memory_space<vmem>>, %arg4: memref<8x128xf32, #tpu.memory_space<vmem>>) attributes {dimension_semantics = [], scalar_prefetch = 0 : i64, scratch_operands = 0 : i64, tpu.core_type = #tpu.core_type<tc>} {
    %c0 = arith.constant 0 : index
    %c0_0 = arith.constant 0 : index
    %0 = vector.load %arg0[%c0, %c0_0] : memref<16x4xf32, #tpu.memory_space<vmem>>, vector<16x4xf32>
    %c0_1 = arith.constant 0 : index
    %c0_2 = arith.constant 0 : index
    %1 = vector.load %arg2[%c0_1, %c0_2] : memref<288x128xf32, #tpu.memory_space<vmem>>, vector<4x128xf32>
    %cst = arith.constant dense<0.000000e+00> : vector<16x128xf32>
    %2 = tpu.matmul %0, %1, %cst {dimension_numbers = #tpu.dot_dimension_numbers<[1], [0], [0], [1], [0, 0, 1, 1], [], []>} : vector<16x4xf32>, vector<4x128xf32>, vector<16x128xf32> -> vector<16x128xf32>
    %c0_3 = arith.constant 0 : index
    %c0_4 = arith.constant 0 : index
    %3 = vector.load %arg3[%c0_3, %c0_4] : memref<8x128xf32, #tpu.memory_space<vmem>>, vector<1x128xf32>
    %4 = vector.broadcast %3 : vector<1x128xf32> to vector<16x128xf32>
    %5 = arith.addf %2, %4 : vector<16x128xf32>
    %cst_5 = arith.constant 0.000000e+00 : f32
    %6 = vector.broadcast %cst_5 : f32 to vector<16x128xf32>
    %7 = arith.cmpf ogt, %5, %6 : vector<16x128xf32>
    %cst_6 = arith.constant 0.000000e+00 : f32
    %8 = vector.broadcast %cst_6 : f32 to vector<16x128xf32>
    %9 = arith.minimumf %5, %8 : vector<16x128xf32>
    %10 = math.exp %9 : vector<16x128xf32>
    %cst_7 = arith.constant 1.000000e+00 : f32
    %11 = vector.broadcast %cst_7 : f32 to vector<16x128xf32>
    %12 = arith.subf %10, %11 : vector<16x128xf32>
    %13 = arith.select %7, %5, %12 : vector<16x128xi1>, vector<16x128xf32>
    %14 = vector.extract_strided_slice %13 {offsets = [0, 0], sizes = [16, 32], strides = [1, 1]} : vector<16x128xf32> to vector<16x32xf32>
    %c8 = arith.constant 8 : index
    %c0_8 = arith.constant 0 : index
    %15 = vector.load %arg2[%c8, %c0_8] : memref<288x128xf32, #tpu.memory_space<vmem>>, vector<32x128xf32>
    %cst_9 = arith.constant dense<0.000000e+00> : vector<16x128xf32>
    %16 = tpu.matmul %14, %15, %cst_9 {dimension_numbers = #tpu.dot_dimension_numbers<[1], [0], [0], [1], [0, 0, 1, 1], [], []>} : vector<16x32xf32>, vector<32x128xf32>, vector<16x128xf32> -> vector<16x128xf32>
    %c1 = arith.constant 1 : index
    %c0_10 = arith.constant 0 : index
    %17 = vector.load %arg3[%c1, %c0_10] : memref<8x128xf32, #tpu.memory_space<vmem>>, vector<1x128xf32>
    %18 = vector.broadcast %17 : vector<1x128xf32> to vector<16x128xf32>
    %19 = arith.addf %16, %18 : vector<16x128xf32>
    %cst_11 = arith.constant 0.000000e+00 : f32
    %20 = vector.broadcast %cst_11 : f32 to vector<16x128xf32>
    %21 = arith.cmpf ogt, %19, %20 : vector<16x128xf32>
    %cst_12 = arith.constant 0.000000e+00 : f32
    %22 = vector.broadcast %cst_12 : f32 to vector<16x128xf32>
    %23 = arith.minimumf %19, %22 : vector<16x128xf32>
    %24 = math.exp %23 : vector<16x128xf32>
    %cst_13 = arith.constant 1.000000e+00 : f32
    %25 = vector.broadcast %cst_13 : f32 to vector<16x128xf32>
    %26 = arith.subf %24, %25 : vector<16x128xf32>
    %27 = arith.select %21, %19, %26 : vector<16x128xi1>, vector<16x128xf32>
    %28 = vector.extract_strided_slice %27 {offsets = [0, 0], sizes = [16, 56], strides = [1, 1]} : vector<16x128xf32> to vector<16x56xf32>
    %c40 = arith.constant 40 : index
    %c0_14 = arith.constant 0 : index
    %29 = vector.load %arg2[%c40, %c0_14] : memref<288x128xf32, #tpu.memory_space<vmem>>, vector<56x128xf32>
    %cst_15 = arith.constant dense<0.000000e+00> : vector<16x128xf32>
    %30 = tpu.matmul %28, %29, %cst_15 {dimension_numbers = #tpu.dot_dimension_numbers<[1], [0], [0], [1], [0, 0, 1, 1], [], []>} : vector<16x56xf32>, vector<56x128xf32>, vector<16x128xf32> -> vector<16x128xf32>
    %c2 = arith.constant 2 : index
    %c0_16 = arith.constant 0 : index
    %31 = vector.load %arg3[%c2, %c0_16] : memref<8x128xf32, #tpu.memory_space<vmem>>, vector<1x128xf32>
    %32 = vector.broadcast %31 : vector<1x128xf32> to vector<16x128xf32>
    %33 = arith.addf %30, %32 : vector<16x128xf32>
    %cst_17 = arith.constant 0.000000e+00 : f32
    %34 = vector.broadcast %cst_17 : f32 to vector<16x128xf32>
    %35 = arith.cmpf ogt, %33, %34 : vector<16x128xf32>
    %cst_18 = arith.constant 0.000000e+00 : f32
    %36 = vector.broadcast %cst_18 : f32 to vector<16x128xf32>
    %37 = arith.minimumf %33, %36 : vector<16x128xf32>
    %38 = math.exp %37 : vector<16x128xf32>
    %cst_19 = arith.constant 1.000000e+00 : f32
    %39 = vector.broadcast %cst_19 : f32 to vector<16x128xf32>
    %40 = arith.subf %38, %39 : vector<16x128xf32>
    %41 = arith.select %35, %33, %40 : vector<16x128xi1>, vector<16x128xf32>
    %42 = vector.extract_strided_slice %41 {offsets = [0, 0], sizes = [16, 56], strides = [1, 1]} : vector<16x128xf32> to vector<16x56xf32>
    %c96 = arith.constant 96 : index
    %c0_20 = arith.constant 0 : index
    %43 = vector.load %arg2[%c96, %c0_20] : memref<288x128xf32, #tpu.memory_space<vmem>>, vector<56x128xf32>
    %cst_21 = arith.constant dense<0.000000e+00> : vector<16x128xf32>
    %44 = tpu.matmul %42, %43, %cst_21 {dimension_numbers = #tpu.dot_dimension_numbers<[1], [0], [0], [1], [0, 0, 1, 1], [], []>} : vector<16x56xf32>, vector<56x128xf32>, vector<16x128xf32> -> vector<16x128xf32>
    %c3 = arith.constant 3 : index
    %c0_22 = arith.constant 0 : index
    %45 = vector.load %arg3[%c3, %c0_22] : memref<8x128xf32, #tpu.memory_space<vmem>>, vector<1x128xf32>
    %46 = vector.broadcast %45 : vector<1x128xf32> to vector<16x128xf32>
    %47 = arith.addf %44, %46 : vector<16x128xf32>
    %48 = tpu.iota {dimensions = array<i32: 0>} : vector<8x16xi32>
    %49 = tpu.iota {dimensions = array<i32: 1>} : vector<8x16xi32>
    %c8_i32 = arith.constant 8 : i32
    %50 = vector.broadcast %c8_i32 : i32 to vector<8x16xi32>
    %51 = arith.muli %48, %50 : vector<8x16xi32>
    %52 = arith.cmpi sge, %49, %51 : vector<8x16xi32>
    %c1_i32 = arith.constant 1 : i32
    %53 = vector.broadcast %c1_i32 : i32 to vector<8x16xi32>
    %54 = arith.addi %48, %53 : vector<8x16xi32>
    %c8_i32_23 = arith.constant 8 : i32
    %55 = vector.broadcast %c8_i32_23 : i32 to vector<8x16xi32>
    %56 = arith.muli %54, %55 : vector<8x16xi32>
    %57 = arith.cmpi slt, %49, %56 : vector<8x16xi32>
    %58 = arith.andi %52, %57 : vector<8x16xi1>
    %c0_24 = arith.constant 0 : index
    %c0_25 = arith.constant 0 : index
    %59 = vector.load %arg1[%c0_24, %c0_25] : memref<1x16xf32, #tpu.memory_space<vmem>>, vector<1x16xf32>
    %cst_26 = arith.constant 0.000000e+00 : f32
    %60 = vector.shape_cast %59 : vector<1x16xf32> to vector<1x16xf32>
    %61 = vector.broadcast %60 : vector<1x16xf32> to vector<8x16xf32>
    %62 = vector.broadcast %cst_26 : f32 to vector<8x16xf32>
    %63 = arith.select %58, %61, %62 : vector<8x16xi1>, vector<8x16xf32>
    %cst_27 = arith.constant dense<0.000000e+00> : vector<8x128xf32>
    %64 = tpu.matmul %63, %47, %cst_27 {dimension_numbers = #tpu.dot_dimension_numbers<[1], [0], [0], [1], [0, 0, 1, 1], [], []>} : vector<8x16xf32>, vector<16x128xf32>, vector<8x128xf32> -> vector<8x128xf32>
    %65 = vector.extract_strided_slice %64 {offsets = [0, 0], sizes = [8, 32], strides = [1, 1]} : vector<8x128xf32> to vector<8x32xf32>
    %c152 = arith.constant 152 : index
    %c0_28 = arith.constant 0 : index
    %66 = vector.load %arg2[%c152, %c0_28] : memref<288x128xf32, #tpu.memory_space<vmem>>, vector<32x128xf32>
    %cst_29 = arith.constant dense<0.000000e+00> : vector<8x128xf32>
    %67 = tpu.matmul %65, %66, %cst_29 {dimension_numbers = #tpu.dot_dimension_numbers<[1], [0], [0], [1], [0, 0, 1, 1], [], []>} : vector<8x32xf32>, vector<32x128xf32>, vector<8x128xf32> -> vector<8x128xf32>
    %c4 = arith.constant 4 : index
    %c0_30 = arith.constant 0 : index
    %68 = vector.load %arg3[%c4, %c0_30] : memref<8x128xf32, #tpu.memory_space<vmem>>, vector<1x128xf32>
    %69 = vector.broadcast %68 : vector<1x128xf32> to vector<8x128xf32>
    %70 = arith.addf %67, %69 : vector<8x128xf32>
    %cst_31 = arith.constant 0.000000e+00 : f32
    %71 = vector.broadcast %cst_31 : f32 to vector<8x128xf32>
    %72 = arith.cmpf ogt, %70, %71 : vector<8x128xf32>
    %cst_32 = arith.constant 0.000000e+00 : f32
    %73 = vector.broadcast %cst_32 : f32 to vector<8x128xf32>
    %74 = arith.minimumf %70, %73 : vector<8x128xf32>
    %75 = math.exp %74 : vector<8x128xf32>
    %cst_33 = arith.constant 1.000000e+00 : f32
    %76 = vector.broadcast %cst_33 : f32 to vector<8x128xf32>
    %77 = arith.subf %75, %76 : vector<8x128xf32>
    %78 = arith.select %72, %70, %77 : vector<8x128xi1>, vector<8x128xf32>
    %79 = vector.extract_strided_slice %78 {offsets = [0, 0], sizes = [8, 56], strides = [1, 1]} : vector<8x128xf32> to vector<8x56xf32>
    %c184 = arith.constant 184 : index
    %c0_34 = arith.constant 0 : index
    %80 = vector.load %arg2[%c184, %c0_34] : memref<288x128xf32, #tpu.memory_space<vmem>>, vector<56x128xf32>
    %cst_35 = arith.constant dense<0.000000e+00> : vector<8x128xf32>
    %81 = tpu.matmul %79, %80, %cst_35 {dimension_numbers = #tpu.dot_dimension_numbers<[1], [0], [0], [1], [0, 0, 1, 1], [], []>} : vector<8x56xf32>, vector<56x128xf32>, vector<8x128xf32> -> vector<8x128xf32>
    %c5 = arith.constant 5 : index
    %c0_36 = arith.constant 0 : index
    %82 = vector.load %arg3[%c5, %c0_36] : memref<8x128xf32, #tpu.memory_space<vmem>>, vector<1x128xf32>
    %83 = vector.broadcast %82 : vector<1x128xf32> to vector<8x128xf32>
    %84 = arith.addf %81, %83 : vector<8x128xf32>
    %cst_37 = arith.constant 0.000000e+00 : f32
    %85 = vector.broadcast %cst_37 : f32 to vector<8x128xf32>
    %86 = arith.cmpf ogt, %84, %85 : vector<8x128xf32>
    %cst_38 = arith.constant 0.000000e+00 : f32
    %87 = vector.broadcast %cst_38 : f32 to vector<8x128xf32>
    %88 = arith.minimumf %84, %87 : vector<8x128xf32>
    %89 = math.exp %88 : vector<8x128xf32>
    %cst_39 = arith.constant 1.000000e+00 : f32
    %90 = vector.broadcast %cst_39 : f32 to vector<8x128xf32>
    %91 = arith.subf %89, %90 : vector<8x128xf32>
    %92 = arith.select %86, %84, %91 : vector<8x128xi1>, vector<8x128xf32>
    %93 = vector.extract_strided_slice %92 {offsets = [0, 0], sizes = [8, 32], strides = [1, 1]} : vector<8x128xf32> to vector<8x32xf32>
    %c240 = arith.constant 240 : index
    %c0_40 = arith.constant 0 : index
    %94 = vector.load %arg2[%c240, %c0_40] : memref<288x128xf32, #tpu.memory_space<vmem>>, vector<32x128xf32>
    %cst_41 = arith.constant dense<0.000000e+00> : vector<8x128xf32>
    %95 = tpu.matmul %93, %94, %cst_41 {dimension_numbers = #tpu.dot_dimension_numbers<[1], [0], [0], [1], [0, 0, 1, 1], [], []>} : vector<8x32xf32>, vector<32x128xf32>, vector<8x128xf32> -> vector<8x128xf32>
    %c6 = arith.constant 6 : index
    %c0_42 = arith.constant 0 : index
    %96 = vector.load %arg3[%c6, %c0_42] : memref<8x128xf32, #tpu.memory_space<vmem>>, vector<1x128xf32>
    %97 = vector.broadcast %96 : vector<1x128xf32> to vector<8x128xf32>
    %98 = arith.addf %95, %97 : vector<8x128xf32>
    %cst_43 = arith.constant 0.000000e+00 : f32
    %99 = vector.broadcast %cst_43 : f32 to vector<8x128xf32>
    %100 = arith.cmpf ogt, %98, %99 : vector<8x128xf32>
    %cst_44 = arith.constant 0.000000e+00 : f32
    %101 = vector.broadcast %cst_44 : f32 to vector<8x128xf32>
    %102 = arith.minimumf %98, %101 : vector<8x128xf32>
    %103 = math.exp %102 : vector<8x128xf32>
    %cst_45 = arith.constant 1.000000e+00 : f32
    %104 = vector.broadcast %cst_45 : f32 to vector<8x128xf32>
    %105 = arith.subf %103, %104 : vector<8x128xf32>
    %106 = arith.select %100, %98, %105 : vector<8x128xi1>, vector<8x128xf32>
    %107 = vector.extract_strided_slice %106 {offsets = [0, 0], sizes = [8, 16], strides = [1, 1]} : vector<8x128xf32> to vector<8x16xf32>
    %c272 = arith.constant 272 : index
    %c0_46 = arith.constant 0 : index
    %108 = vector.load %arg2[%c272, %c0_46] : memref<288x128xf32, #tpu.memory_space<vmem>>, vector<16x128xf32>
    %cst_47 = arith.constant dense<0.000000e+00> : vector<8x128xf32>
    %109 = tpu.matmul %107, %108, %cst_47 {dimension_numbers = #tpu.dot_dimension_numbers<[1], [0], [0], [1], [0, 0, 1, 1], [], []>} : vector<8x16xf32>, vector<16x128xf32>, vector<8x128xf32> -> vector<8x128xf32>
    %c7 = arith.constant 7 : index
    %c0_48 = arith.constant 0 : index
    %110 = vector.load %arg3[%c7, %c0_48] : memref<8x128xf32, #tpu.memory_space<vmem>>, vector<1x128xf32>
    %111 = vector.broadcast %110 : vector<1x128xf32> to vector<8x128xf32>
    %112 = arith.addf %109, %111 : vector<8x128xf32>
    %c0_49 = arith.constant 0 : index
    %c0_50 = arith.constant 0 : index
    %113 = vector.load %arg4[%c0_49, %c0_50] : memref<8x128xf32, #tpu.memory_space<vmem>>, vector<8x128xf32>
    tpu.vector_store %arg4[%c0_49, %c0_50], %112 {strides = array<i32>} : memref<8x128xf32, #tpu.memory_space<vmem>>, vector<8x128xf32>,
    return
  }
}

</mosaic_0001>

<llo_original>
// kernel: forward.1
$region0: #{forward.1}
  #allocation0 [shape = 'u32[]', space=smem, size = 0x4, offset = 0x4, fixed_abs, tag = 'smem constant byte address 0x4 - core index']
  #allocation1 [shape = 'u32[144,128]{1,0:T(1,128)}', space=vmem, size = 0x12000, scoped, tag = 'internal scratch']
  %s0 = inlined_call_operand.vmem [shape: f32[16,4], index: 0, kind: input, shape index: {}]
  %s1 = inlined_call_operand.vmem [shape: f32[1,16], index: 1, kind: input, shape index: {}]
  %s2 = inlined_call_operand.hbm [shape: f32[288,128], index: 2, kind: input, shape index: {}]
  %s3 = inlined_call_operand.vmem [shape: f32[8,128], index: 3, kind: input, shape index: {}]
  %s4 = inlined_call_operand.vmem [shape: f32[8,128], index: 4, kind: output, shape index: {}]
  %s5 = sld [smem:[#allocation0]]
  $region30: #{forward.1} parent=0
    _
  %s7 = ssub.s32 1, %s5
  %s8 = scalar_select 0, %s7, %s5
  $region1: #{forward.1} parent=0
    #allocation2 [shape = 'u8[147456]{0}', space=vmem, size = 0x24000, scoped, tag = 'input window, operand 2, single buffered']
    #allocation3 [shape = 's32[1]{0}', space=sflag, size = 0x4, scoped, tag = 'scoped memory for forward.1']
    %9 = vsyncpa [#allocation3], 0
    // Predicated region
    $region2: #{forward.1} parent=1 // pred_check
      _
    $region3: #{forward.1} parent=1 // pred_check_branch
      %11 = sbr.rel (0) target = $region5
    $region4: #{forward.1} parent=1 // pred_region
      _
    $region5: #{forward.1} parent=1 // pred_fallthru
      _
    // Predicated region
    $region6: #{forward.1} parent=1 // pred_check
      _
    $region7: #{forward.1} parent=1 // pred_check_branch
      %13 = sbr.rel (0) target = $region9
    $region8: #{forward.1} parent=1 // pred_region
      _
    $region9: #{forward.1} parent=1 // pred_fallthru
      _
    // Predicated region
    $region10: #{forward.1} parent=1 // pred_check
      _
    $region11: #{forward.1} parent=1 // pred_check_branch
      %15 = sbr.rel (0) target = $region13
    $region12: #{forward.1} parent=1 // pred_region
      %s17 = ssub.s32 4608, 4608
      %18 = vsyncadd [#allocation3], %s17
      %s19 = sshll.u32 [#allocation2], 4
      %s20 = int_to_ptr.vmem [resolvable:$true] %s19
      %25 = dma.hbm_to_vmem [thread:$0]  %s2, 4608, %s20, [#allocation3], 128, 128, 8
    $region13: #{forward.1} parent=1 // pred_fallthru
      _
    // Predicated region
    $region14: #{forward.1} parent=1 // pred_check
      _
    $region15: #{forward.1} parent=1 // pred_check_branch
      %27 = sbr.rel (0) target = $region17
    $region16: #{forward.1} parent=1 // pred_region
      _
    $region17: #{forward.1} parent=1 // pred_fallthru
      _
    // Predicated region
    $region18: #{forward.1} parent=1 // pred_check
      _
    $region19: #{forward.1} parent=1 // pred_check_branch
      %29 = sbr.rel (0) target = $region21
    $region20: #{forward.1} parent=1 // pred_region
      %30 = dma.done [#allocation3], 4608
    $region21: #{forward.1} parent=1 // pred_fallthru
      _
    %v31 = vld [vmem:[%s0] sm:$0xff]
    %v32 = vld [vmem:[%s0 + $0x8] sm:$0xff]
    %v33 = vld [vmem:[#allocation2] sm:$0xf]
    %v34 = vld [vmem:[%s3] sm:$0x1]
    %v35 = vlaneseq
    %v36 = vshrl.u32 %v35, 7
    %v37 = vsub.s32 0, %v36
    %v38 = vrot.slane %v34, %v37
    %vm39 = vcmask 31744
    %v41 = vsel %vm39, %v31, 0
    %v44 = vsel %vm39, %v32, 0
    %vm46 = vcmask 1043456
    %v48 = vsel %vm46, %v33, 0
    %50 = vmatprep.subr.mxu0 0.0
    %51 = vmatpush1.msra.mxu0 0.0
    %52 = vmatprep.subr.mxu0 0.0
    %53 = vmatpush1.msra.mxu0 0.0
    %54 = vmatprep.subr.mxu0 0.0
    %55 = vmatpush1.msra.mxu0 0.0
    %56 = vmatprep.subr.mxu0 0.0
    %57 = vmatpush1.msra.mxu0 0.0
    %58 = vmatprep.subr.mxu0 0.0
    %59 = vmatpush1.msra.mxu0 0.0
    %60 = vmatprep.subr.mxu0 0.0
    %61 = vmatpush1.msra.mxu0 0.0
    %62 = vmatprep.subr.mxu0 0.0
    %63 = vmatpush1.msra.mxu0 0.0
    %64 = vmatprep.subr.mxu0 0.0
    %65 = vmatpush1.msra.mxu0 0.0
    %66 = vmatprep.subr.mxu0 0.0
    %67 = vmatpush1.msra.mxu0 0.0
    %68 = vmatprep.subr.mxu0 0.0
    %69 = vmatpush1.msra.mxu0 0.0
    %70 = vmatprep.subr.mxu0 0.0
    %71 = vmatpush1.msra.mxu0 0.0
    %72 = vmatprep.subr.mxu0 0.0
    %73 = vmatpush1.msra.mxu0 0.0
    %74 = vmatprep.subr.mxu0 0.0
    %75 = vmatpush1.msra.mxu0 0.0
    %76 = vmatprep.subr.mxu0 0.0
    %77 = vmatpush1.msra.mxu0 0.0
    %78 = vmatprep.subr.mxu0 0.0
    %79 = vmatpush1.msra.mxu0 0.0
    %80 = vmatprep.subr.mxu0 0.0
    %81 = vmatpush1.msra.mxu0 %v48
    %82 = vmatprep.subr.mxu0 0.0
    %83 = vmatpush2.msra.mxu0 0.0
    %84 = vmatprep.subr.mxu0 0.0
    %85 = vmatpush2.msra.mxu0 0.0
    %86 = vmatprep.subr.mxu0 0.0
    %87 = vmatpush2.msra.mxu0 0.0
    %88 = vmatprep.subr.mxu0 0.0
    %89 = vmatpush2.msra.mxu0 0.0
    %90 = vmatprep.subr.mxu0 0.0
    %91 = vmatpush2.msra.mxu0 0.0
    %92 = vmatprep.subr.mxu0 0.0
    %93 = vmatpush2.msra.mxu0 0.0
    %94 = vmatprep.subr.mxu0 0.0
    %95 = vmatpush2.msra.mxu0 0.0
    %96 = vmatprep.subr.mxu0 0.0
    %97 = vmatpush2.msra.mxu0 0.0
    %98 = vmatprep.subr.mxu0 0.0
    %99 = vmatpush2.msra.mxu0 0.0
    %100 = vmatprep.subr.mxu0 0.0
    %101 = vmatpush2.msra.mxu0 0.0
    %102 = vmatprep.subr.mxu0 0.0
    %103 = vmatpush2.msra.mxu0 0.0
    %104 = vmatprep.subr.mxu0 0.0
    %105 = vmatpush2.msra.mxu0 0.0
    %106 = vmatprep.subr.mxu0 0.0
    %107 = vmatpush2.msra.mxu0 0.0
    %108 = vmatprep.subr.mxu0 0.0
    %109 = vmatpush2.msra.mxu0 0.0
    %110 = vmatprep.subr.mxu0 0.0
    %111 = vmatpush2.msra.mxu0 0.0
    %112 = vmatprep.subr.mxu0 0.0
    %113 = vmatpush2.msra.mxu0 0.0
    %114 = vmatprep.mubr.f32.mxu0 0.0
    %115 = vmatmul.mubr.f32.gmra.mxu0 %v41
    %v116 = vpop.f32.mrf.mxu0
    %v117 = vadd.f32 %v38, %v116
    %v118 = vpop.f32.mrf.mxu0
    %119 = vmatprep.mubr.f32.mxu0 0.0
    %120 = vmatmul.mubr.f32.gmra.mxu0 %v44
    %v121 = vpop.f32.mrf.mxu0
    %v122 = vadd.f32 %v38, %v121
    %v123 = vpop.f32.mrf.mxu0
    %124 = vdwg.mxu0
    %vm125 = vcmp.gt.f32.partialorder %v117, 0.0
    %vm126 = vcmp.gt.f32.partialorder %v122, 0.0
    %v127 = vmin.f32 %v117, 0.0
    %v128 = vmin.f32 %v122, 0.0
    %v129 = vmul.f32 %v127, 1.442695
    %v130 = vpow.pop %v129
    %v131 = vmul.f32 %v128, 1.442695
    %v132 = vpow.pop %v131
    %v133 = vsub.f32 %v130, 1.0
    %v134 = vsub.f32 %v132, 1.0
    %v135 = vsel %vm125, %v117, %v133
    %v136 = vsel %vm126, %v122, %v134
    %v137 = vld [vmem:[#allocation2 + $0x8] sm:$0xff]
    %v138 = vld [vmem:[#allocation2 + $0x10] sm:$0xff]
    %v139 = vld [vmem:[#allocation2 + $0x18] sm:$0xff]
    %v140 = vld [vmem:[#allocation2 + $0x20] sm:$0xff]
    %v141 = vld [vmem:[%s3 + $0x1] sm:$0x1]
    %v142 = vlaneseq
    %v143 = vshrl.u32 %v142, 7
    %v144 = vsub.s32 0, %v143
    %v145 = vrot.slane %v141, %v144
    %vm146 = vcmask 261120
    %v148 = vsel %vm146, %v135, 0
    %v151 = vsel %vm146, %v136, 0
    %153 = vmatprep.subr.mxu0 0.0
    %154 = vmatpush1.msra.mxu0 0.0
    %155 = vmatprep.subr.mxu0 0.0
    %156 = vmatpush1.msra.mxu0 0.0
    %157 = vmatprep.subr.mxu0 0.0
    %158 = vmatpush1.msra.mxu0 0.0
    %159 = vmatprep.subr.mxu0 0.0
    %160 = vmatpush1.msra.mxu0 0.0
    %161 = vmatprep.subr.mxu0 0.0
    %162 = vmatpush1.msra.mxu0 0.0
    %163 = vmatprep.subr.mxu0 0.0
    %164 = vmatpush1.msra.mxu0 0.0
    %165 = vmatprep.subr.mxu0 0.0
    %166 = vmatpush1.msra.mxu0 0.0
    %167 = vmatprep.subr.mxu0 0.0
    %168 = vmatpush1.msra.mxu0 0.0
    %169 = vmatprep.subr.mxu0 0.0
    %170 = vmatpush1.msra.mxu0 0.0
    %171 = vmatprep.subr.mxu0 0.0
    %172 = vmatpush1.msra.mxu0 0.0
    %173 = vmatprep.subr.mxu0 0.0
    %174 = vmatpush1.msra.mxu0 0.0
    %175 = vmatprep.subr.mxu0 0.0
    %176 = vmatpush1.msra.mxu0 0.0
    %177 = vmatprep.subr.mxu0 0.0
    %178 = vmatpush1.msra.mxu0 %v140
    %179 = vmatprep.subr.mxu0 0.0
    %180 = vmatpush1.msra.mxu0 %v139
    %181 = vmatprep.subr.mxu0 0.0
    %182 = vmatpush1.msra.mxu0 %v138
    %183 = vmatprep.subr.mxu0 0.0
    %184 = vmatpush1.msra.mxu0 %v137
    %185 = vmatprep.subr.mxu0 0.0
    %186 = vmatpush2.msra.mxu0 0.0
    %187 = vmatprep.subr.mxu0 0.0
    %188 = vmatpush2.msra.mxu0 0.0
    %189 = vmatprep.subr.mxu0 0.0
    %190 = vmatpush2.msra.mxu0 0.0
    %191 = vmatprep.subr.mxu0 0.0
    %192 = vmatpush2.msra.mxu0 0.0
    %193 = vmatprep.subr.mxu0 0.0
    %194 = vmatpush2.msra.mxu0 0.0
    %195 = vmatprep.subr.mxu0 0.0
    %196 = vmatpush2.msra.mxu0 0.0
    %197 = vmatprep.subr.mxu0 0.0
    %198 = vmatpush2.msra.mxu0 0.0
    %199 = vmatprep.subr.mxu0 0.0
    %200 = vmatpush2.msra.mxu0 0.0
    %201 = vmatprep.subr.mxu0 0.0
    %202 = vmatpush2.msra.mxu0 0.0
    %203 = vmatprep.subr.mxu0 0.0
    %204 = vmatpush2.msra.mxu0 0.0
    %205 = vmatprep.subr.mxu0 0.0
    %206 = vmatpush2.msra.mxu0 0.0
    %207 = vmatprep.subr.mxu0 0.0
    %208 = vmatpush2.msra.mxu0 0.0
    %209 = vmatprep.subr.mxu0 0.0
    %210 = vmatpush2.msra.mxu0 0.0
    %211 = vmatprep.subr.mxu0 0.0
    %212 = vmatpush2.msra.mxu0 0.0
    %213 = vmatprep.subr.mxu0 0.0
    %214 = vmatpush2.msra.mxu0 0.0
    %215 = vmatprep.subr.mxu0 0.0
    %216 = vmatpush2.msra.mxu0 0.0
    %217 = vmatprep.mubr.f32.mxu0 0.0
    %218 = vmatmul.mubr.f32.gmra.mxu0 %v148
    %v219 = vpop.f32.mrf.mxu0
    %v220 = vadd.f32 %v145, %v219
    %v221 = vpop.f32.mrf.mxu0
    %222 = vmatprep.mubr.f32.mxu0 0.0
    %223 = vmatmul.mubr.f32.gmra.mxu0 %v151
    %v224 = vpop.f32.mrf.mxu0
    %v225 = vadd.f32 %v145, %v224
    %v226 = vpop.f32.mrf.mxu0
    %227 = vdwg.mxu0
    %vm228 = vcmp.gt.f32.partialorder %v220, 0.0
    %vm229 = vcmp.gt.f32.partialorder %v225, 0.0
    %v230 = vmin.f32 %v220, 0.0
    %v231 = vmin.f32 %v225, 0.0
    %v232 = vmul.f32 %v230, 1.442695
    %v233 = vpow.pop %v232
    %v234 = vmul.f32 %v231, 1.442695
    %v235 = vpow.pop %v234
    %v236 = vsub.f32 %v233, 1.0
    %v237 = vsub.f32 %v235, 1.0
    %v238 = vsel %vm228, %v220, %v236
    %v239 = vsel %vm229, %v225, %v237
    %v240 = vld [vmem:[#allocation2 + $0x28] sm:$0xff]
    %v241 = vld [vmem:[#allocation2 + $0x30] sm:$0xff]
    %v242 = vld [vmem:[#allocation2 + $0x38] sm:$0xff]
    %v243 = vld [vmem:[#allocation2 + $0x40] sm:$0xff]
    %v244 = vld [vmem:[#allocation2 + $0x48] sm:$0xff]
    %v245 = vld [vmem:[#allocation2 + $0x50] sm:$0xff]
    %v246 = vld [vmem:[#allocation2 + $0x58] sm:$0xff]
    %v247 = vld [vmem:[%s3 + $0x2] sm:$0x1]
    %v248 = vlaneseq
    %v249 = vshrl.u32 %v248, 7
    %v250 = vsub.s32 0, %v249
    %v251 = vrot.slane %v247, %v250
    %vm252 = vcmask 457728
    %v254 = vsel %vm252, %v238, 0
    %v257 = vsel %vm252, %v239, 0
    %259 = vmatprep.subr.mxu0 0.0
    %260 = vmatpush1.msra.mxu0 0.0
    %261 = vmatprep.subr.mxu0 0.0
    %262 = vmatpush1.msra.mxu0 0.0
    %263 = vmatprep.subr.mxu0 0.0
    %264 = vmatpush1.msra.mxu0 0.0
    %265 = vmatprep.subr.mxu0 0.0
    %266 = vmatpush1.msra.mxu0 0.0
    %267 = vmatprep.subr.mxu0 0.0
    %268 = vmatpush1.msra.mxu0 0.0
    %269 = vmatprep.subr.mxu0 0.0
    %270 = vmatpush1.msra.mxu0 0.0
    %271 = vmatprep.subr.mxu0 0.0
    %272 = vmatpush1.msra.mxu0 0.0
    %273 = vmatprep.subr.mxu0 0.0
    %274 = vmatpush1.msra.mxu0 0.0
    %275 = vmatprep.subr.mxu0 0.0
    %276 = vmatpush1.msra.mxu0 0.0
    %277 = vmatprep.subr.mxu0 0.0
    %278 = vmatpush1.msra.mxu0 %v246
    %279 = vmatprep.subr.mxu0 0.0
    %280 = vmatpush1.msra.mxu0 %v245
    %281 = vmatprep.subr.mxu0 0.0
    %282 = vmatpush1.msra.mxu0 %v244
    %283 = vmatprep.subr.mxu0 0.0
    %284 = vmatpush1.msra.mxu0 %v243
    %285 = vmatprep.subr.mxu0 0.0
    %286 = vmatpush1.msra.mxu0 %v242
    %287 = vmatprep.subr.mxu0 0.0
    %288 = vmatpush1.msra.mxu0 %v241
    %289 = vmatprep.subr.mxu0 0.0
    %290 = vmatpush1.msra.mxu0 %v240
    %291 = vmatprep.subr.mxu0 0.0
    %292 = vmatpush2.msra.mxu0 0.0
    %293 = vmatprep.subr.mxu0 0.0
    %294 = vmatpush2.msra.mxu0 0.0
    %295 = vmatprep.subr.mxu0 0.0
    %296 = vmatpush2.msra.mxu0 0.0
    %297 = vmatprep.subr.mxu0 0.0
    %298 = vmatpush2.msra.mxu0 0.0
    %299 = vmatprep.subr.mxu0 0.0
    %300 = vmatpush2.msra.mxu0 0.0
    %301 = vmatprep.subr.mxu0 0.0
    %302 = vmatpush2.msra.mxu0 0.0
    %303 = vmatprep.subr.mxu0 0.0
    %304 = vmatpush2.msra.mxu0 0.0
    %305 = vmatprep.subr.mxu0 0.0
    %306 = vmatpush2.msra.mxu0 0.0
    %307 = vmatprep.subr.mxu0 0.0
    %308 = vmatpush2.msra.mxu0 0.0
    %309 = vmatprep.subr.mxu0 0.0
    %310 = vmatpush2.msra.mxu0 0.0
    %311 = vmatprep.subr.mxu0 0.0
    %312 = vmatpush2.msra.mxu0 0.0
    %313 = vmatprep.subr.mxu0 0.0
    %314 = vmatpush2.msra.mxu0 0.0
    %315 = vmatprep.subr.mxu0 0.0
    %316 = vmatpush2.msra.mxu0 0.0
    %317 = vmatprep.subr.mxu0 0.0
    %318 = vmatpush2.msra.mxu0 0.0
    %319 = vmatprep.subr.mxu0 0.0
    %320 = vmatpush2.msra.mxu0 0.0
    %321 = vmatprep.subr.mxu0 0.0
    %322 = vmatpush2.msra.mxu0 0.0
    %323 = vmatprep.mubr.f32.mxu0 0.0
    %324 = vmatmul.mubr.f32.gmra.mxu0 %v254
    %v325 = vpop.f32.mrf.mxu0
    %v326 = vadd.f32 %v251, %v325
    %v327 = vpop.f32.mrf.mxu0
    %328 = vmatprep.mubr.f32.mxu0 0.0
    %329 = vmatmul.mubr.f32.gmra.mxu0 %v257
    %v330 = vpop.f32.mrf.mxu0
    %v331 = vadd.f32 %v251, %v330
    %v332 = vpop.f32.mrf.mxu0
    %333 = vdwg.mxu0
    %vm334 = vcmp.gt.f32.partialorder %v326, 0.0
    %vm335 = vcmp.gt.f32.partialorder %v331, 0.0
    %v336 = vmin.f32 %v326, 0.0
    %v337 = vmin.f32 %v331, 0.0
    %v338 = vmul.f32 %v336, 1.442695
    %v339 = vpow.pop %v338
    %v340 = vmul.f32 %v337, 1.442695
    %v341 = vpow.pop %v340
    %v342 = vsub.f32 %v339, 1.0
    %v343 = vsub.f32 %v341, 1.0
    %v344 = vsel %vm334, %v326, %v342
    %v345 = vsel %vm335, %v331, %v343
    %v346 = vld [vmem:[#allocation2 + $0x60] sm:$0xff]
    %v347 = vld [vmem:[#allocation2 + $0x68] sm:$0xff]
    %v348 = vld [vmem:[#allocation2 + $0x70] sm:$0xff]
    %v349 = vld [vmem:[#allocation2 + $0x78] sm:$0xff]
    %v350 = vld [vmem:[#allocation2 + $0x80] sm:$0xff]
    %v351 = vld [vmem:[#allocation2 + $0x88] sm:$0xff]
    %v352 = vld [vmem:[#allocation2 + $0x90] sm:$0xff]
    %v353 = vld [vmem:[%s3 + $0x3] sm:$0x1]
    %v354 = vlaneseq
    %v355 = vshrl.u32 %v354, 7
    %v356 = vsub.s32 0, %v355
    %v357 = vrot.slane %v353, %v356
    %v359 = vsel %vm252, %v344, 0
    %v362 = vsel %vm252, %v345, 0
    %364 = vmatprep.subr.mxu0 0.0
    %365 = vmatpush1.msra.mxu0 0.0
    %366 = vmatprep.subr.mxu0 0.0
    %367 = vmatpush1.msra.mxu0 0.0
    %368 = vmatprep.subr.mxu0 0.0
    %369 = vmatpush1.msra.mxu0 0.0
    %370 = vmatprep.subr.mxu0 0.0
    %371 = vmatpush1.msra.mxu0 0.0
    %372 = vmatprep.subr.mxu0 0.0
    %373 = vmatpush1.msra.mxu0 0.0
    %374 = vmatprep.subr.mxu0 0.0
    %375 = vmatpush1.msra.mxu0 0.0
    %376 = vmatprep.subr.mxu0 0.0
    %377 = vmatpush1.msra.mxu0 0.0
    %378 = vmatprep.subr.mxu0 0.0
    %379 = vmatpush1.msra.mxu0 0.0
    %380 = vmatprep.subr.mxu0 0.0
    %381 = vmatpush1.msra.mxu0 0.0
    %382 = vmatprep.subr.mxu0 0.0
    %383 = vmatpush1.msra.mxu0 %v352
    %384 = vmatprep.subr.mxu0 0.0
    %385 = vmatpush1.msra.mxu0 %v351
    %386 = vmatprep.subr.mxu0 0.0
    %387 = vmatpush1.msra.mxu0 %v350
    %388 = vmatprep.subr.mxu0 0.0
    %389 = vmatpush1.msra.mxu0 %v349
    %390 = vmatprep.subr.mxu0 0.0
    %391 = vmatpush1.msra.mxu0 %v348
    %392 = vmatprep.subr.mxu0 0.0
    %393 = vmatpush1.msra.mxu0 %v347
    %394 = vmatprep.subr.mxu0 0.0
    %395 = vmatpush1.msra.mxu0 %v346
    %396 = vmatprep.subr.mxu0 0.0
    %397 = vmatpush2.msra.mxu0 0.0
    %398 = vmatprep.subr.mxu0 0.0
    %399 = vmatpush2.msra.mxu0 0.0
    %400 = vmatprep.subr.mxu0 0.0
    %401 = vmatpush2.msra.mxu0 0.0
    %402 = vmatprep.subr.mxu0 0.0
    %403 = vmatpush2.msra.mxu0 0.0
    %404 = vmatprep.subr.mxu0 0.0
    %405 = vmatpush2.msra.mxu0 0.0
    %406 = vmatprep.subr.mxu0 0.0
    %407 = vmatpush2.msra.mxu0 0.0
    %408 = vmatprep.subr.mxu0 0.0
    %409 = vmatpush2.msra.mxu0 0.0
    %410 = vmatprep.subr.mxu0 0.0
    %411 = vmatpush2.msra.mxu0 0.0
    %412 = vmatprep.subr.mxu0 0.0
    %413 = vmatpush2.msra.mxu0 0.0
    %414 = vmatprep.subr.mxu0 0.0
    %415 = vmatpush2.msra.mxu0 0.0
    %416 = vmatprep.subr.mxu0 0.0
    %417 = vmatpush2.msra.mxu0 0.0
    %418 = vmatprep.subr.mxu0 0.0
    %419 = vmatpush2.msra.mxu0 0.0
    %420 = vmatprep.subr.mxu0 0.0
    %421 = vmatpush2.msra.mxu0 0.0
    %422 = vmatprep.subr.mxu0 0.0
    %423 = vmatpush2.msra.mxu0 0.0
    %424 = vmatprep.subr.mxu0 0.0
    %425 = vmatpush2.msra.mxu0 0.0
    %426 = vmatprep.subr.mxu0 0.0
    %427 = vmatpush2.msra.mxu0 0.0
    %428 = vmatprep.mubr.f32.mxu0 0.0
    %429 = vmatmul.mubr.f32.gmra.mxu0 %v359
    %v430 = vpop.f32.mrf.mxu0
    %v431 = vadd.f32 %v357, %v430
    %v432 = vpop.f32.mrf.mxu0
    %433 = vmatprep.mubr.f32.mxu0 0.0
    %434 = vmatmul.mubr.f32.gmra.mxu0 %v362
    %v435 = vpop.f32.mrf.mxu0
    %v436 = vadd.f32 %v357, %v435
    %v437 = vpop.f32.mrf.mxu0
    %438 = vdwg.mxu0
    %v439 = vlaneseq
    %v440 = vshrl.u32 %v439, 7
    %v441 = vlaneseq
    %v442 = vand.u32 %v441, 127
    %v443 = vmul.u32 %v440, 8
    %vm444 = vcmp.ge.s32.totalorder %v442, %v443
    %v445 = vadd.s32 %v440, 1
    %v446 = vmul.u32 %v445, 8
    %vm447 = vcmp.lt.s32.totalorder %v442, %v446
    %vm448 = vmand %vm444, %vm447
    %v449 = vld [vmem:[%s1] sm:$0x1]
    %v451 = vlaneseq
    %v452 = vshrl.u32 %v451, 7
    %v453 = vsub.s32 0, %v452
    %v454 = vrot.slane %v449, %v453
    %v456 = vsel %vm448, %v454, 0.0
    %vm457 = vcmask 130048
    %v459 = vsel %vm457, %v456, 0
    %461 = vmatprep.subr.mxu0 0.0
    %462 = vmatpush1.msra.mxu0 0.0
    %463 = vmatprep.subr.mxu0 0.0
    %464 = vmatpush1.msra.mxu0 0.0
    %465 = vmatprep.subr.mxu0 0.0
    %466 = vmatpush1.msra.mxu0 0.0
    %467 = vmatprep.subr.mxu0 0.0
    %468 = vmatpush1.msra.mxu0 0.0
    %469 = vmatprep.subr.mxu0 0.0
    %470 = vmatpush1.msra.mxu0 0.0
    %471 = vmatprep.subr.mxu0 0.0
    %472 = vmatpush1.msra.mxu0 0.0
    %473 = vmatprep.subr.mxu0 0.0
    %474 = vmatpush1.msra.mxu0 0.0
    %475 = vmatprep.subr.mxu0 0.0
    %476 = vmatpush1.msra.mxu0 0.0
    %477 = vmatprep.subr.mxu0 0.0
    %478 = vmatpush1.msra.mxu0 0.0
    %479 = vmatprep.subr.mxu0 0.0
    %480 = vmatpush1.msra.mxu0 0.0
    %481 = vmatprep.subr.mxu0 0.0
    %482 = vmatpush1.msra.mxu0 0.0
    %483 = vmatprep.subr.mxu0 0.0
    %484 = vmatpush1.msra.mxu0 0.0
    %485 = vmatprep.subr.mxu0 0.0
    %486 = vmatpush1.msra.mxu0 0.0
    %487 = vmatprep.subr.mxu0 0.0
    %488 = vmatpush1.msra.mxu0 0.0
    %489 = vmatprep.subr.mxu0 0.0
    %490 = vmatpush1.msra.mxu0 %v436
    %491 = vmatprep.subr.mxu0 0.0
    %492 = vmatpush1.msra.mxu0 %v431
    %493 = vmatprep.subr.mxu0 0.0
    %494 = vmatpush2.msra.mxu0 0.0
    %495 = vmatprep.subr.mxu0 0.0
    %496 = vmatpush2.msra.mxu0 0.0
    %497 = vmatprep.subr.mxu0 0.0
    %498 = vmatpush2.msra.mxu0 0.0
    %499 = vmatprep.subr.mxu0 0.0
    %500 = vmatpush2.msra.mxu0 0.0
    %501 = vmatprep.subr.mxu0 0.0
    %502 = vmatpush2.msra.mxu0 0.0
    %503 = vmatprep.subr.mxu0 0.0
    %504 = vmatpush2.msra.mxu0 0.0
    %505 = vmatprep.subr.mxu0 0.0
    %506 = vmatpush2.msra.mxu0 0.0
    %507 = vmatprep.subr.mxu0 0.0
    %508 = vmatpush2.msra.mxu0 0.0
    %509 = vmatprep.subr.mxu0 0.0
    %510 = vmatpush2.msra.mxu0 0.0
    %511 = vmatprep.subr.mxu0 0.0
    %512 = vmatpush2.msra.mxu0 0.0
    %513 = vmatprep.subr.mxu0 0.0
    %514 = vmatpush2.msra.mxu0 0.0
    %515 = vmatprep.subr.mxu0 0.0
    %516 = vmatpush2.msra.mxu0 0.0
    %517 = vmatprep.subr.mxu0 0.0
    %518 = vmatpush2.msra.mxu0 0.0
    %519 = vmatprep.subr.mxu0 0.0
    %520 = vmatpush2.msra.mxu0 0.0
    %521 = vmatprep.subr.mxu0 0.0
    %522 = vmatpush2.msra.mxu0 0.0
    %523 = vmatprep.subr.mxu0 0.0
    %524 = vmatpush2.msra.mxu0 0.0
    %525 = vmatprep.mubr.f32.mxu0 0.0
    %526 = vmatmul.mubr.f32.gmra.mxu0 %v459
    %v527 = vpop.f32.mrf.mxu0
    %v528 = vadd.f32 0.0, %v527
    %v529 = vpop.f32.mrf.mxu0
    %530 = vdwg.mxu0
    %v531 = vld [vmem:[#allocation2 + $0x98] sm:$0xff]
    %v532 = vld [vmem:[#allocation2 + $0xa0] sm:$0xff]
    %v533 = vld [vmem:[#allocation2 + $0xa8] sm:$0xff]
    %v534 = vld [vmem:[#allocation2 + $0xb0] sm:$0xff]
    %v535 = vld [vmem:[%s3 + $0x4] sm:$0x1]
    %v536 = vlaneseq
    %v537 = vshrl.u32 %v536, 7
    %v538 = vsub.s32 0, %v537
    %v539 = vrot.slane %v535, %v538
    %v541 = vsel %vm146, %v528, 0
    %543 = vmatprep.subr.mxu0 0.0
    %544 = vmatpush1.msra.mxu0 0.0
    %545 = vmatprep.subr.mxu0 0.0
    %546 = vmatpush1.msra.mxu0 0.0
    %547 = vmatprep.subr.mxu0 0.0
    %548 = vmatpush1.msra.mxu0 0.0
    %549 = vmatprep.subr.mxu0 0.0
    %550 = vmatpush1.msra.mxu0 0.0
    %551 = vmatprep.subr.mxu0 0.0
    %552 = vmatpush1.msra.mxu0 0.0
    %553 = vmatprep.subr.mxu0 0.0
    %554 = vmatpush1.msra.mxu0 0.0
    %555 = vmatprep.subr.mxu0 0.0
    %556 = vmatpush1.msra.mxu0 0.0
    %557 = vmatprep.subr.mxu0 0.0
    %558 = vmatpush1.msra.mxu0 0.0
    %559 = vmatprep.subr.mxu0 0.0
    %560 = vmatpush1.msra.mxu0 0.0
    %561 = vmatprep.subr.mxu0 0.0
    %562 = vmatpush1.msra.mxu0 0.0
    %563 = vmatprep.subr.mxu0 0.0
    %564 = vmatpush1.msra.mxu0 0.0
    %565 = vmatprep.subr.mxu0 0.0
    %566 = vmatpush1.msra.mxu0 0.0
    %567 = vmatprep.subr.mxu0 0.0
    %568 = vmatpush1.msra.mxu0 %v534
    %569 = vmatprep.subr.mxu0 0.0
    %570 = vmatpush1.msra.mxu0 %v533
    %571 = vmatprep.subr.mxu0 0.0
    %572 = vmatpush1.msra.mxu0 %v532
    %573 = vmatprep.subr.mxu0 0.0
    %574 = vmatpush1.msra.mxu0 %v531
    %575 = vmatprep.subr.mxu0 0.0
    %576 = vmatpush2.msra.mxu0 0.0
    %577 = vmatprep.subr.mxu0 0.0
    %578 = vmatpush2.msra.mxu0 0.0
    %579 = vmatprep.subr.mxu0 0.0
    %580 = vmatpush2.msra.mxu0 0.0
    %581 = vmatprep.subr.mxu0 0.0
    %582 = vmatpush2.msra.mxu0 0.0
    %583 = vmatprep.subr.mxu0 0.0
    %584 = vmatpush2.msra.mxu0 0.0
    %585 = vmatprep.subr.mxu0 0.0
    %586 = vmatpush2.msra.mxu0 0.0
    %587 = vmatprep.subr.mxu0 0.0
    %588 = vmatpush2.msra.mxu0 0.0
    %589 = vmatprep.subr.mxu0 0.0
    %590 = vmatpush2.msra.mxu0 0.0
    %591 = vmatprep.subr.mxu0 0.0
    %592 = vmatpush2.msra.mxu0 0.0
    %593 = vmatprep.subr.mxu0 0.0
    %594 = vmatpush2.msra.mxu0 0.0
    %595 = vmatprep.subr.mxu0 0.0
    %596 = vmatpush2.msra.mxu0 0.0
    %597 = vmatprep.subr.mxu0 0.0
    %598 = vmatpush2.msra.mxu0 0.0
    %599 = vmatprep.subr.mxu0 0.0
    %600 = vmatpush2.msra.mxu0 0.0
    %601 = vmatprep.subr.mxu0 0.0
    %602 = vmatpush2.msra.mxu0 0.0
    %603 = vmatprep.subr.mxu0 0.0
    %604 = vmatpush2.msra.mxu0 0.0
    %605 = vmatprep.subr.mxu0 0.0
    %606 = vmatpush2.msra.mxu0 0.0
    %607 = vmatprep.mubr.f32.mxu0 0.0
    %608 = vmatmul.mubr.f32.gmra.mxu0 %v541
    %v609 = vpop.f32.mrf.mxu0
    %v610 = vadd.f32 %v539, %v609
    %v611 = vpop.f32.mrf.mxu0
    %612 = vdwg.mxu0
    %vm613 = vcmp.gt.f32.partialorder %v610, 0.0
    %v614 = vmin.f32 %v610, 0.0
    %v615 = vmul.f32 %v614, 1.442695
    %v616 = vpow.pop %v615
    %v617 = vsub.f32 %v616, 1.0
    %v618 = vsel %vm613, %v610, %v617
    %v619 = vld [vmem:[#allocation2 + $0xb8] sm:$0xff]
    %v620 = vld [vmem:[#allocation2 + $0xc0] sm:$0xff]
    %v621 = vld [vmem:[#allocation2 + $0xc8] sm:$0xff]
    %v622 = vld [vmem:[#allocation2 + $0xd0] sm:$0xff]
    %v623 = vld [vmem:[#allocation2 + $0xd8] sm:$0xff]
    %v624 = vld [vmem:[#allocation2 + $0xe0] sm:$0xff]
    %v625 = vld [vmem:[#allocation2 + $0xe8] sm:$0xff]
    %v626 = vld [vmem:[%s3 + $0x5] sm:$0x1]
    %v627 = vlaneseq
    %v628 = vshrl.u32 %v627, 7
    %v629 = vsub.s32 0, %v628
    %v630 = vrot.slane %v626, %v629
    %v632 = vsel %vm252, %v618, 0
    %634 = vmatprep.subr.mxu0 0.0
    %635 = vmatpush1.msra.mxu0 0.0
    %636 = vmatprep.subr.mxu0 0.0
    %637 = vmatpush1.msra.mxu0 0.0
    %638 = vmatprep.subr.mxu0 0.0
    %639 = vmatpush1.msra.mxu0 0.0
    %640 = vmatprep.subr.mxu0 0.0
    %641 = vmatpush1.msra.mxu0 0.0
    %642 = vmatprep.subr.mxu0 0.0
    %643 = vmatpush1.msra.mxu0 0.0
    %644 = vmatprep.subr.mxu0 0.0
    %645 = vmatpush1.msra.mxu0 0.0
    %646 = vmatprep.subr.mxu0 0.0
    %647 = vmatpush1.msra.mxu0 0.0
    %648 = vmatprep.subr.mxu0 0.0
    %649 = vmatpush1.msra.mxu0 0.0
    %650 = vmatprep.subr.mxu0 0.0
    %651 = vmatpush1.msra.mxu0 0.0
    %652 = vmatprep.subr.mxu0 0.0
    %653 = vmatpush1.msra.mxu0 %v625
    %654 = vmatprep.subr.mxu0 0.0
    %655 = vmatpush1.msra.mxu0 %v624
    %656 = vmatprep.subr.mxu0 0.0
    %657 = vmatpush1.msra.mxu0 %v623
    %658 = vmatprep.subr.mxu0 0.0
    %659 = vmatpush1.msra.mxu0 %v622
    %660 = vmatprep.subr.mxu0 0.0
    %661 = vmatpush1.msra.mxu0 %v621
    %662 = vmatprep.subr.mxu0 0.0
    %663 = vmatpush1.msra.mxu0 %v620
    %664 = vmatprep.subr.mxu0 0.0
    %665 = vmatpush1.msra.mxu0 %v619
    %666 = vmatprep.subr.mxu0 0.0
    %667 = vmatpush2.msra.mxu0 0.0
    %668 = vmatprep.subr.mxu0 0.0
    %669 = vmatpush2.msra.mxu0 0.0
    %670 = vmatprep.subr.mxu0 0.0
    %671 = vmatpush2.msra.mxu0 0.0
    %672 = vmatprep.subr.mxu0 0.0
    %673 = vmatpush2.msra.mxu0 0.0
    %674 = vmatprep.subr.mxu0 0.0
    %675 = vmatpush2.msra.mxu0 0.0
    %676 = vmatprep.subr.mxu0 0.0
    %677 = vmatpush2.msra.mxu0 0.0
    %678 = vmatprep.subr.mxu0 0.0
    %679 = vmatpush2.msra.mxu0 0.0
    %680 = vmatprep.subr.mxu0 0.0
    %681 = vmatpush2.msra.mxu0 0.0
    %682 = vmatprep.subr.mxu0 0.0
    %683 = vmatpush2.msra.mxu0 0.0
    %684 = vmatprep.subr.mxu0 0.0
    %685 = vmatpush2.msra.mxu0 0.0
    %686 = vmatprep.subr.mxu0 0.0
    %687 = vmatpush2.msra.mxu0 0.0
    %688 = vmatprep.subr.mxu0 0.0
    %689 = vmatpush2.msra.mxu0 0.0
    %690 = vmatprep.subr.mxu0 0.0
    %691 = vmatpush2.msra.mxu0 0.0
    %692 = vmatprep.subr.mxu0 0.0
    %693 = vmatpush2.msra.mxu0 0.0
    %694 = vmatprep.subr.mxu0 0.0
    %695 = vmatpush2.msra.mxu0 0.0
    %696 = vmatprep.subr.mxu0 0.0
    %697 = vmatpush2.msra.mxu0 0.0
    %698 = vmatprep.mubr.f32.mxu0 0.0
    %699 = vmatmul.mubr.f32.gmra.mxu0 %v632
    %v700 = vpop.f32.mrf.mxu0
    %v701 = vadd.f32 %v630, %v700
    %v702 = vpop.f32.mrf.mxu0
    %703 = vdwg.mxu0
    %vm704 = vcmp.gt.f32.partialorder %v701, 0.0
    %v705 = vmin.f32 %v701, 0.0
    %v706 = vmul.f32 %v705, 1.442695
    %v707 = vpow.pop %v706
    %v708 = vsub.f32 %v707, 1.0
    %v709 = vsel %vm704, %v701, %v708
    %v710 = vld [vmem:[#allocation2 + $0xf0] sm:$0xff]
    %v711 = vld [vmem:[#allocation2 + $0xf8] sm:$0xff]
    %v712 = vld [vmem:[#allocation2 + $0x100] sm:$0xff]
    %v713 = vld [vmem:[#allocation2 + $0x108] sm:$0xff]
    %v714 = vld [vmem:[%s3 + $0x6] sm:$0x1]
    %v715 = vlaneseq
    %v716 = vshrl.u32 %v715, 7
    %v717 = vsub.s32 0, %v716
    %v718 = vrot.slane %v714, %v717
    %v720 = vsel %vm146, %v709, 0
    %722 = vmatprep.subr.mxu0 0.0
    %723 = vmatpush1.msra.mxu0 0.0
    %724 = vmatprep.subr.mxu0 0.0
    %725 = vmatpush1.msra.mxu0 0.0
    %726 = vmatprep.subr.mxu0 0.0
    %727 = vmatpush1.msra.mxu0 0.0
    %728 = vmatprep.subr.mxu0 0.0
    %729 = vmatpush1.msra.mxu0 0.0
    %730 = vmatprep.subr.mxu0 0.0
    %731 = vmatpush1.msra.mxu0 0.0
    %732 = vmatprep.subr.mxu0 0.0
    %733 = vmatpush1.msra.mxu0 0.0
    %734 = vmatprep.subr.mxu0 0.0
    %735 = vmatpush1.msra.mxu0 0.0
    %736 = vmatprep.subr.mxu0 0.0
    %737 = vmatpush1.msra.mxu0 0.0
    %738 = vmatprep.subr.mxu0 0.0
    %739 = vmatpush1.msra.mxu0 0.0
    %740 = vmatprep.subr.mxu0 0.0
    %741 = vmatpush1.msra.mxu0 0.0
    %742 = vmatprep.subr.mxu0 0.0
    %743 = vmatpush1.msra.mxu0 0.0
    %744 = vmatprep.subr.mxu0 0.0
    %745 = vmatpush1.msra.mxu0 0.0
    %746 = vmatprep.subr.mxu0 0.0
    %747 = vmatpush1.msra.mxu0 %v713
    %748 = vmatprep.subr.mxu0 0.0
    %749 = vmatpush1.msra.mxu0 %v712
    %750 = vmatprep.subr.mxu0 0.0
    %751 = vmatpush1.msra.mxu0 %v711
    %752 = vmatprep.subr.mxu0 0.0
    %753 = vmatpush1.msra.mxu0 %v710
    %754 = vmatprep.subr.mxu0 0.0
    %755 = vmatpush2.msra.mxu0 0.0
    %756 = vmatprep.subr.mxu0 0.0
    %757 = vmatpush2.msra.mxu0 0.0
    %758 = vmatprep.subr.mxu0 0.0
    %759 = vmatpush2.msra.mxu0 0.0
    %760 = vmatprep.subr.mxu0 0.0
    %761 = vmatpush2.msra.mxu0 0.0
    %762 = vmatprep.subr.mxu0 0.0
    %763 = vmatpush2.msra.mxu0 0.0
    %764 = vmatprep.subr.mxu0 0.0
    %765 = vmatpush2.msra.mxu0 0.0
    %766 = vmatprep.subr.mxu0 0.0
    %767 = vmatpush2.msra.mxu0 0.0
    %768 = vmatprep.subr.mxu0 0.0
    %769 = vmatpush2.msra.mxu0 0.0
    %770 = vmatprep.subr.mxu0 0.0
    %771 = vmatpush2.msra.mxu0 0.0
    %772 = vmatprep.subr.mxu0 0.0
    %773 = vmatpush2.msra.mxu0 0.0
    %774 = vmatprep.subr.mxu0 0.0
    %775 = vmatpush2.msra.mxu0 0.0
    %776 = vmatprep.subr.mxu0 0.0
    %777 = vmatpush2.msra.mxu0 0.0
    %778 = vmatprep.subr.mxu0 0.0
    %779 = vmatpush2.msra.mxu0 0.0
    %780 = vmatprep.subr.mxu0 0.0
    %781 = vmatpush2.msra.mxu0 0.0
    %782 = vmatprep.subr.mxu0 0.0
    %783 = vmatpush2.msra.mxu0 0.0
    %784 = vmatprep.subr.mxu0 0.0
    %785 = vmatpush2.msra.mxu0 0.0
    %786 = vmatprep.mubr.f32.mxu0 0.0
    %787 = vmatmul.mubr.f32.gmra.mxu0 %v720
    %v788 = vpop.f32.mrf.mxu0
    %v789 = vadd.f32 %v718, %v788
    %v790 = vpop.f32.mrf.mxu0
    %791 = vdwg.mxu0
    %vm792 = vcmp.gt.f32.partialorder %v789, 0.0
    %v793 = vmin.f32 %v789, 0.0
    %v794 = vmul.f32 %v793, 1.442695
    %v795 = vpow.pop %v794
    %v796 = vsub.f32 %v795, 1.0
    %v797 = vsel %vm792, %v789, %v796
    %v798 = vld [vmem:[#allocation2 + $0x110] sm:$0xff]
    %v799 = vld [vmem:[#allocation2 + $0x118] sm:$0xff]
    %v800 = vld [vmem:[%s3 + $0x7] sm:$0x1]
    %v801 = vlaneseq
    %v802 = vshrl.u32 %v801, 7
    %v803 = vsub.s32 0, %v802
    %v804 = vrot.slane %v800, %v803
    %v806 = vsel %vm457, %v797, 0
    %808 = vmatprep.subr.mxu0 0.0
    %809 = vmatpush1.msra.mxu0 0.0
    %810 = vmatprep.subr.mxu0 0.0
    %811 = vmatpush1.msra.mxu0 0.0
    %812 = vmatprep.subr.mxu0 0.0
    %813 = vmatpush1.msra.mxu0 0.0
    %814 = vmatprep.subr.mxu0 0.0
    %815 = vmatpush1.msra.mxu0 0.0
    %816 = vmatprep.subr.mxu0 0.0
    %817 = vmatpush1.msra.mxu0 0.0
    %818 = vmatprep.subr.mxu0 0.0
    %819 = vmatpush1.msra.mxu0 0.0
    %820 = vmatprep.subr.mxu0 0.0
    %821 = vmatpush1.msra.mxu0 0.0
    %822 = vmatprep.subr.mxu0 0.0
    %823 = vmatpush1.msra.mxu0 0.0
    %824 = vmatprep.subr.mxu0 0.0
    %825 = vmatpush1.msra.mxu0 0.0
    %826 = vmatprep.subr.mxu0 0.0
    %827 = vmatpush1.msra.mxu0 0.0
    %828 = vmatprep.subr.mxu0 0.0
    %829 = vmatpush1.msra.mxu0 0.0
    %830 = vmatprep.subr.mxu0 0.0
    %831 = vmatpush1.msra.mxu0 0.0
    %832 = vmatprep.subr.mxu0 0.0
    %833 = vmatpush1.msra.mxu0 0.0
    %834 = vmatprep.subr.mxu0 0.0
    %835 = vmatpush1.msra.mxu0 0.0
    %836 = vmatprep.subr.mxu0 0.0
    %837 = vmatpush1.msra.mxu0 %v799
    %838 = vmatprep.subr.mxu0 0.0
    %839 = vmatpush1.msra.mxu0 %v798
    %840 = vmatprep.subr.mxu0 0.0
    %841 = vmatpush2.msra.mxu0 0.0
    %842 = vmatprep.subr.mxu0 0.0
    %843 = vmatpush2.msra.mxu0 0.0
    %844 = vmatprep.subr.mxu0 0.0
    %845 = vmatpush2.msra.mxu0 0.0
    %846 = vmatprep.subr.mxu0 0.0
    %847 = vmatpush2.msra.mxu0 0.0
    %848 = vmatprep.subr.mxu0 0.0
    %849 = vmatpush2.msra.mxu0 0.0
    %850 = vmatprep.subr.mxu0 0.0
    %851 = vmatpush2.msra.mxu0 0.0
    %852 = vmatprep.subr.mxu0 0.0
    %853 = vmatpush2.msra.mxu0 0.0
    %854 = vmatprep.subr.mxu0 0.0
    %855 = vmatpush2.msra.mxu0 0.0
    %856 = vmatprep.subr.mxu0 0.0
    %857 = vmatpush2.msra.mxu0 0.0
    %858 = vmatprep.subr.mxu0 0.0
    %859 = vmatpush2.msra.mxu0 0.0
    %860 = vmatprep.subr.mxu0 0.0
    %861 = vmatpush2.msra.mxu0 0.0
    %862 = vmatprep.subr.mxu0 0.0
    %863 = vmatpush2.msra.mxu0 0.0
    %864 = vmatprep.subr.mxu0 0.0
    %865 = vmatpush2.msra.mxu0 0.0
    %866 = vmatprep.subr.mxu0 0.0
    %867 = vmatpush2.msra.mxu0 0.0
    %868 = vmatprep.subr.mxu0 0.0
    %869 = vmatpush2.msra.mxu0 0.0
    %870 = vmatprep.subr.mxu0 0.0
    %871 = vmatpush2.msra.mxu0 0.0
    %872 = vmatprep.mubr.f32.mxu0 0.0
    %873 = vmatmul.mubr.f32.gmra.mxu0 %v806
    %v874 = vpop.f32.mrf.mxu0
    %v875 = vadd.f32 %v804, %v874
    %v876 = vpop.f32.mrf.mxu0
    %877 = vdwg.mxu0
    %878 = vst [vmem:[%s4] sm:$0xff] %v875
    // Predicated region
    $region22: #{forward.1} parent=1 // pred_check
      _
    $region23: #{forward.1} parent=1 // pred_check_branch
      %880 = sbr.rel (0) target = $region25
    $region24: #{forward.1} parent=1 // pred_region
      _
    $region25: #{forward.1} parent=1 // pred_fallthru
      _
    // Predicated region
    $region26: #{forward.1} parent=1 // pred_check
      _
    $region27: #{forward.1} parent=1 // pred_check_branch
      %882 = sbr.rel (0) target = $region29
    $region28: #{forward.1} parent=1 // pred_region
      _
    $region29: #{forward.1} parent=1 // pred_fallthru
      _
    %883 = vsyncpa [#allocation3], 1

</llo_original>
